<compile_context>
chip_gen: v7x
topology: tpu7x:2x2x1
jax: 0.10.0
libtpu: 0.0.40
codegen_flags: <defaults>
</compile_context>

<pallas_src>
import jax
import jax.numpy as jnp
from jax.experimental import pallas as pl
from jax.experimental.pallas import tpu as pltpu

BN_EPS = 1e-5
LEAKY_SLOPE = 0.01        # PyTorch nn.LeakyReLU default
TM_CAP = 32768            # max columns per tile (keeps per-step blocks sane)


def _round_up(x, m):
    return (x + m - 1) // m * m


def _conv_stats_kernel(w_ref, patches_ref, y_ref, psum_ref, psumsq_ref):
    # Conv tile as one MXU matmul: [C, K]bf16 @ [K, TM]bf16 -> [C, TM]f32.
    y = jnp.dot(w_ref[...], patches_ref[...], preferred_element_type=jnp.float32)
    y_ref[...] = y.astype(y_ref.dtype)                       # bf16 round-trip to HBM
    # Per-channel partial stats over this tile's columns (padded columns are exactly 0,
    # so they contribute nothing; true counts are applied in the wrapper combine).
    psum_ref[...] = jnp.sum(y, axis=1, keepdims=True)[None]
    psumsq_ref[...] = jnp.sum(y * y, axis=1, keepdims=True)[None]


def _bn_act_kernel(scale_ref, shift_ref, y_ref, out_ref):
    y = y_ref[...].astype(jnp.float32)                       # [C, TM]
    bn = y * scale_ref[...] + shift_ref[...]                 # folded BN: one FMA
    out_ref[...] = jnp.maximum(bn, LEAKY_SLOPE * bn).astype(out_ref.dtype)


def downsample(x_nchw, conv_weight, gamma, beta):
    """x_nchw: [N, C, H, W] f32. conv_weight: [C, C, 3, 3] OIHW. Returns [N, C, OH, OW] f32."""
    N, C, H, W = x_nchw.shape
    OH = (H + 2 - 3) // 2 + 1
    OW = (W + 2 - 3) // 2 + 1
    M = N * OH * OW
    K = 9 * C

    # --- glue (XLA): NHWC, reflect pad, im2col laid out [K, M] (tap-major, channel-minor
    # rows; pixels along the lane axis).  Cast to bf16 to halve the patch stream.
    x = jnp.transpose(x_nchw, (0, 2, 3, 1))
    x_pad = jnp.pad(x, ((0, 0), (1, 1), (1, 1), (0, 0)), mode="reflect")
    taps = []
    for ky in range(3):
        for kx in range(3):
            taps.append(x_pad[:, ky:ky + 2 * (OH - 1) + 1:2,
                              kx:kx + 2 * (OW - 1) + 1:2, :])
    patches = jnp.stack(taps, axis=0)                        # [9, N, OH, OW, C]
    patches = jnp.transpose(patches, (0, 4, 1, 2, 3)).reshape(K, M).astype(jnp.bfloat16)

    # Weight OIHW -> [C_out, (kh, kw, cin)] = [C, K], matching the patch row order.
    w_lhs = jnp.transpose(conv_weight, (0, 2, 3, 1)).reshape(C, K).astype(jnp.bfloat16)

    # --- TM from a per-generation VMEM byte budget ---
    cap = 64 * 1024 * 1024                                    # conservative fallback (v7x)
    try:
        cap = int(getattr(pltpu.get_tpu_info(), "vmem_capacity_bytes", cap))
    except Exception:
        pass
    vmem_limit = min(cap * 3 // 4, 96 * 1024 * 1024)          # ~48 MiB v7x, 96 MiB v5e/v6e
    block_budget = vmem_limit // 2                            # headroom for temps / scratch
    per_col = max(4 * K + 8 * C, 20 * C)                      # double-buffered blocks + f32 temp, B/col
    TM = max(128, min(TM_CAP, block_budget // per_col))
    TM = (TM // 128) * 128
    TM = min(TM, _round_up(M, 128))                           # don't over-pad small problems
    Mp = _round_up(M, TM)
    n_mt = Mp // TM
    if Mp != M:
        patches = jnp.pad(patches, ((0, 0), (0, Mp - M)))

    # ---------------- Pass 1: conv + per-tile batch statistics ----------------
    y_bf16, psum, psumsq = pl.pallas_call(
        _conv_stats_kernel,
        out_shape=(
            jax.ShapeDtypeStruct((C, Mp), jnp.bfloat16),      # conv output, bf16 round-trip
            jax.ShapeDtypeStruct((n_mt, C, 1), jnp.float32),  # per-tile sum(y)
            jax.ShapeDtypeStruct((n_mt, C, 1), jnp.float32),  # per-tile sum(y*y)
        ),
        grid_spec=pltpu.PrefetchScalarGridSpec(
            num_scalar_prefetch=0,
            grid=(n_mt,),
            in_specs=[
                pl.BlockSpec((C, K), lambda m: (0, 0)),       # grid-invariant weight
                pl.BlockSpec((K, TM), lambda m: (0, m)),
            ],
            out_specs=[
                pl.BlockSpec((C, TM), lambda m: (0, m)),
                pl.BlockSpec((1, C, 1), lambda m: (m, 0, 0)),
                pl.BlockSpec((1, C, 1), lambda m: (m, 0, 0)),
            ],
        ),
        compiler_params=pltpu.CompilerParams(
            dimension_semantics=("parallel",),                # independent m-tiles -> both v7x TCs
            vmem_limit_bytes=vmem_limit,
        ),
        cost_estimate=pl.CostEstimate(
            flops=2 * C * K * Mp,
            transcendentals=0,
            bytes_accessed=K * Mp * 2 + C * K * 2 + C * Mp * 2 + 2 * n_mt * C * 4,
        ),
    )(w_lhs, patches)

    # --- fold BN into scale/shift (tiny jnp math); Chan-style per-tile variance combine ---
    counts = jnp.minimum(TM, M - TM * jnp.arange(n_mt)).astype(jnp.float32)   # valid cols/tile
    s = psum[:, :, 0]                                          # [n_mt, C]
    ss = psumsq[:, :, 0]
    mean_j = s / counts[:, None]
    m2_j = jnp.maximum(ss - s * mean_j, 0.0)                   # per-tile centered sum of squares
    mean = jnp.sum(s, axis=0) / M
    m2 = jnp.sum(m2_j + counts[:, None] * jnp.square(mean_j - mean[None, :]), axis=0)
    var = jnp.maximum(m2 / M, 0.0)                             # biased variance (PyTorch training BN)
    inv_std = jax.lax.rsqrt(var + BN_EPS)
    scale_flat = gamma.astype(jnp.float32) * inv_std
    shift_flat = beta.astype(jnp.float32) - mean * scale_flat
    scale = scale_flat.reshape(C, 1)
    shift = shift_flat.reshape(C, 1)

    # ---------------- Pass 2: normalize + LeakyReLU ----------------
    out_flat = pl.pallas_call(
        _bn_act_kernel,
        out_shape=jax.ShapeDtypeStruct((C, Mp), jnp.float32),
        grid_spec=pltpu.PrefetchScalarGridSpec(
            num_scalar_prefetch=0,
            grid=(n_mt,),
            in_specs=[
                pl.BlockSpec((C, 1), lambda m: (0, 0)),
                pl.BlockSpec((C, 1), lambda m: (0, 0)),
                pl.BlockSpec((C, TM), lambda m: (0, m)),
            ],
            out_specs=pl.BlockSpec((C, TM), lambda m: (0, m)),
        ),
        compiler_params=pltpu.CompilerParams(
            dimension_semantics=("parallel",),
            vmem_limit_bytes=vmem_limit,
        ),
        cost_estimate=pl.CostEstimate(
            flops=3 * C * Mp,
            transcendentals=0,
            bytes_accessed=C * Mp * 2 + C * Mp * 4 + 2 * C * 4,
        ),
    )(scale, shift, y_bf16)

    out = out_flat[:, :M].reshape(C, N, OH, OW)
    return jnp.transpose(out, (1, 0, 2, 3))


def _reference(x_nchw, conv_weight, gamma, beta):
    """Pure-JAX f32 reference (same math as the PyTorch module, no Pallas)."""
    N, C, H, W = x_nchw.shape
    x = jnp.transpose(x_nchw, (0, 2, 3, 1))
    x_pad = jnp.pad(x, ((0, 0), (1, 1), (1, 1), (0, 0)), mode="reflect")
    OH = (H + 2 - 3) // 2 + 1
    OW = (W + 2 - 3) // 2 + 1
    taps = []
    for ky in range(3):
        for kx in range(3):
            taps.append(x_pad[:, ky:ky + 2 * (OH - 1) + 1:2,
                              kx:kx + 2 * (OW - 1) + 1:2, :])
    patches = jnp.stack(taps, axis=3).reshape(N * OH * OW, 9 * C)
    w_mat = jnp.transpose(conv_weight, (2, 3, 1, 0)).reshape(9 * C, C)
    y = jnp.dot(patches, w_mat, preferred_element_type=jnp.float32)
    mean = jnp.mean(y, axis=0, keepdims=True)
    var = jnp.mean((y - mean) ** 2, axis=0, keepdims=True)
    bn = (y - mean) * jax.lax.rsqrt(var + BN_EPS) * gamma.reshape(1, C) + beta.reshape(1, C)
    out = jnp.where(bn >= 0, bn, LEAKY_SLOPE * bn)
    return out.reshape(N, OH, OW, C).transpose(0, 3, 1, 2)


if __name__ == "__main__":
    # Small shapes consistent with the module: batch=2, channel=4, spatial=16x16.
    N, C, H, W = 2, 4, 16, 16
    key = jax.random.PRNGKey(0)
    kx, kw = jax.random.split(key)

    x = jax.random.normal(kx, (N, C, H, W), dtype=jnp.float32)
    conv_weight = 0.1 * jax.random.normal(kw, (C, C, 3, 3), dtype=jnp.float32)  # OIHW, bias=False
    gamma = jnp.ones((C,), dtype=jnp.float32)   # BatchNorm2d weight default
    beta = jnp.zeros((C,), dtype=jnp.float32)   # BatchNorm2d bias default

    out = jax.block_until_ready(downsample(x, conv_weight, gamma, beta))
    ref = jax.block_until_ready(_reference(x, conv_weight, gamma, beta))

    assert out.shape == (N, C, H // 2, W // 2), out.shape
    max_err = float(jnp.max(jnp.abs(out - ref)))
    assert max_err < 5e-2, f"mismatch vs reference: {max_err}"

    print("KERNEL_OK")
</pallas_src>

<mosaic_0001>
module attributes {stable_mosaic.version = 11 : i64} {
  func.func @_conv_stats_kernel(%arg0: i32, %arg1: memref<4x36xbf16, #tpu.memory_space<vmem>>, %arg2: memref<36x128xbf16, #tpu.memory_space<vmem>>, %arg3: memref<4x128xbf16, #tpu.memory_space<vmem>>, %arg4: memref<1x4x1xf32, #tpu.memory_space<vmem>>, %arg5: memref<1x4x1xf32, #tpu.memory_space<vmem>>) attributes {dimension_semantics = [#tpu.dimension_semantics<parallel>], iteration_bounds = array<i64: 1>, scalar_prefetch = 0 : i64, scratch_operands = 0 : i64, tpu.core_type = #tpu.core_type<tc>, window_params = [{pipeline_mode = #tpu.pipeline_mode<synchronous>, transform_indices = @transform_0, window_bounds = array<i64: 4, 36>}, {transform_indices = @transform_1, window_bounds = array<i64: 36, 128>}, {transform_indices = @transform_2, window_bounds = array<i64: 4, 128>}, {transform_indices = @transform_3, window_bounds = array<i64: 1, 4, 1>}, {transform_indices = @transform_4, window_bounds = array<i64: 1, 4, 1>}]} {
    %c0 = arith.constant 0 : index
    %c0_0 = arith.constant 0 : index
    %0 = vector.load %arg1[%c0, %c0_0] : memref<4x36xbf16, #tpu.memory_space<vmem>>, vector<4x36xbf16>
    %c0_1 = arith.constant 0 : index
    %c0_2 = arith.constant 0 : index
    %1 = vector.load %arg2[%c0_1, %c0_2] : memref<36x128xbf16, #tpu.memory_space<vmem>>, vector<36x128xbf16>
    %cst = arith.constant dense<0.000000e+00> : vector<4x128xf32>
    %2 = tpu.matmul %0, %1, %cst {dimension_numbers = #tpu.dot_dimension_numbers<[1], [0], [0], [1], [0, 0, 1, 1], [], []>} : vector<4x36xbf16>, vector<36x128xbf16>, vector<4x128xf32> -> vector<4x128xf32>
    %3 = arith.truncf %2 : vector<4x128xf32> to vector<4x128xbf16>
    %c0_3 = arith.constant 0 : index
    %c0_4 = arith.constant 0 : index
    %4 = vector.load %arg3[%c0_3, %c0_4] : memref<4x128xbf16, #tpu.memory_space<vmem>>, vector<4x128xbf16>
    tpu.vector_store %arg3[%c0_3, %c0_4], %3 {strides = array<i32>} : memref<4x128xbf16, #tpu.memory_space<vmem>>, vector<4x128xbf16>,
    %cst_5 = arith.constant dense<0.000000e+00> : vector<4xf32>
    %5 = vector.multi_reduction <add>, %2, %cst_5 [1] : vector<4x128xf32> to vector<4xf32>
    %6 = vector.shape_cast %5 : vector<4xf32> to vector<4x1xf32>
    %7 = vector.shape_cast %6 : vector<4x1xf32> to vector<1x4x1xf32>
    %c0_6 = arith.constant 0 : index
    %c0_7 = arith.constant 0 : index
    %c0_8 = arith.constant 0 : index
    %8 = vector.load %arg4[%c0_6, %c0_7, %c0_8] : memref<1x4x1xf32, #tpu.memory_space<vmem>>, vector<1x4x1xf32>
    tpu.vector_store %arg4[%c0_6, %c0_7, %c0_8], %7 {strides = array<i32>} : memref<1x4x1xf32, #tpu.memory_space<vmem>>, vector<1x4x1xf32>,
    %9 = arith.mulf %2, %2 : vector<4x128xf32>
    %cst_9 = arith.constant dense<0.000000e+00> : vector<4xf32>
    %10 = vector.multi_reduction <add>, %9, %cst_9 [1] : vector<4x128xf32> to vector<4xf32>
    %11 = vector.shape_cast %10 : vector<4xf32> to vector<4x1xf32>
    %12 = vector.shape_cast %11 : vector<4x1xf32> to vector<1x4x1xf32>
    %c0_10 = arith.constant 0 : index
    %c0_11 = arith.constant 0 : index
    %c0_12 = arith.constant 0 : index
    %13 = vector.load %arg5[%c0_10, %c0_11, %c0_12] : memref<1x4x1xf32, #tpu.memory_space<vmem>>, vector<1x4x1xf32>
    tpu.vector_store %arg5[%c0_10, %c0_11, %c0_12], %12 {strides = array<i32>} : memref<1x4x1xf32, #tpu.memory_space<vmem>>, vector<1x4x1xf32>,
    return
  }
  func.func @transform_0(%arg0: i32) -> (i32, i32) {
    %c0_i32 = arith.constant 0 : i32
    %c0_i32_0 = arith.constant 0 : i32
    %c0_i32_1 = arith.constant 0 : i32
    return %c0_i32, %c0_i32_0 : i32, i32
  }
  func.func @transform_1(%arg0: i32) -> (i32, i32) {
    %c0_i32 = arith.constant 0 : i32
    %c0_i32_0 = arith.constant 0 : i32
    return %c0_i32, %arg0 : i32, i32
  }
  func.func @transform_2(%arg0: i32) -> (i32, i32) {
    %c0_i32 = arith.constant 0 : i32
    %c0_i32_0 = arith.constant 0 : i32
    return %c0_i32, %arg0 : i32, i32
  }
  func.func @transform_3(%arg0: i32) -> (i32, i32, i32) {
    %c0_i32 = arith.constant 0 : i32
    %c0_i32_0 = arith.constant 0 : i32
    %c0_i32_1 = arith.constant 0 : i32
    return %arg0, %c0_i32, %c0_i32_0 : i32, i32, i32
  }
  func.func @transform_4(%arg0: i32) -> (i32, i32, i32) {
    %c0_i32 = arith.constant 0 : i32
    %c0_i32_0 = arith.constant 0 : i32
    %c0_i32_1 = arith.constant 0 : i32
    return %arg0, %c0_i32, %c0_i32_0 : i32, i32, i32
  }
}

</mosaic_0001>

<llo_original>
// kernel: tpu_custom_call.1
$region0: #{tpu_custom_call.1}
  #allocation0 [shape = 'u32[]', space=smem, size = 0x4, offset = 0x4, fixed_abs, tag = 'smem constant byte address 0x4 - core index']
  #allocation1 [shape = 'u32[144,128]{1,0:T(1,128)}', space=vmem, size = 0x12000, scoped, tag = 'internal scratch']
  %s0 = inlined_call_operand.hbm [shape: bf16[4,36], index: 0, kind: input, shape index: {}]
  %s1 = inlined_call_operand.hbm [shape: bf16[36,128], index: 1, kind: input, shape index: {}]
  %s2 = inlined_call_operand.hbm [shape: bf16[4,128], index: 2, kind: output, shape index: {0}]
  %s3 = inlined_call_operand.vmem [shape: f32[1,4,1], index: 3, kind: output, shape index: {1}]
  %s4 = inlined_call_operand.vmem [shape: f32[1,4,1], index: 4, kind: output, shape index: {2}]
  %5 = xla_tuple %s2, %s3, %s4
  %s6 = sld [smem:[#allocation0]]
  $region42: #{tpu_custom_call.1} parent=0
    _
  %s8 = ssub.s32 1, %s6
  %s9 = scalar_select 0, %s8, %s6
  $region1: #{tpu_custom_call.1} parent=0
    #allocation2 [shape = 'u8[1024]{0}', space=vmem, size = 0x400, scoped, tag = 'input window, operand 0, single buffered']
    #allocation3 [shape = 's32[1]{0}', space=sflag, size = 0x4, scoped, tag = 'scoped memory for tpu_custom_call.1']
    #allocation4 [shape = 's32[1]{0}', space=sflag, size = 0x4, scoped, tag = 'scoped memory for tpu_custom_call.1']
    #allocation5 [shape = 'u8[10240]{0}', space=vmem, size = 0x2800, scoped, tag = 'input window, operand 1, single buffered']
    #allocation6 [shape = 's32[1]{0}', space=sflag, size = 0x4, scoped, tag = 'scoped memory for tpu_custom_call.1']
    #allocation7 [shape = 'u8[1024]{0}', space=vmem, size = 0x400, scoped, tag = 'output window, operand 0, single buffered']
    %10 = vsyncpa [#allocation3], 0
    %11 = vsyncpa [#allocation6], 0
    %12 = vsyncpa [#allocation4], 0
    // Predicated region
    $region2: #{tpu_custom_call.1} parent=1 // pred_check
      _
    $region3: #{tpu_custom_call.1} parent=1 // pred_check_branch
      %14 = sbr.rel (0) target = $region5
    $region4: #{tpu_custom_call.1} parent=1 // pred_region
      %s16 = ssub.s32 32, 32
      %17 = vsyncadd [#allocation3], %s16
      %s19 = sshll.u32 [#allocation2], 4
      %s20 = int_to_ptr.vmem [resolvable:$true] %s19
      %22 = dma.hbm_to_vmem [thread:$0]  %s0, 32, %s20, [#allocation3]
    $region5: #{tpu_custom_call.1} parent=1 // pred_fallthru
      _
    // Predicated region
    $region6: #{tpu_custom_call.1} parent=1 // pred_check
      _
    $region7: #{tpu_custom_call.1} parent=1 // pred_check_branch
      %24 = sbr.rel (0) target = $region9
    $region8: #{tpu_custom_call.1} parent=1 // pred_region
      %s26 = ssub.s32 320, 320
      %27 = vsyncadd [#allocation6], %s26
      %s28 = sshll.u32 [#allocation5], 4
      %s29 = int_to_ptr.vmem [resolvable:$true] %s28
      %34 = dma.hbm_to_vmem [thread:$0]  %s1, 320, %s29, [#allocation6], 64, 64, 4
    $region9: #{tpu_custom_call.1} parent=1 // pred_fallthru
      _
    // Predicated region
    $region10: #{tpu_custom_call.1} parent=1 // pred_check
      _
    $region11: #{tpu_custom_call.1} parent=1 // pred_check_branch
      %36 = sbr.rel (0) target = $region13
    $region12: #{tpu_custom_call.1} parent=1 // pred_region
      %37 = dma.done [#allocation3], 32
    $region13: #{tpu_custom_call.1} parent=1 // pred_fallthru
      _
    // Predicated region
    $region14: #{tpu_custom_call.1} parent=1 // pred_check
      _
    $region15: #{tpu_custom_call.1} parent=1 // pred_check_branch
      %39 = sbr.rel (0) target = $region17
    $region16: #{tpu_custom_call.1} parent=1 // pred_region
      %40 = dma.done [#allocation6], 320
    $region17: #{tpu_custom_call.1} parent=1 // pred_fallthru
      _
    %v42 = vld [vmem:[#allocation2] sm:$0x3]
    %v43 = vld [vmem:[#allocation5] sm:$0xf]
    %v44 = vld [vmem:[#allocation5 + $0x4] sm:$0xf]
    %v45 = vld [vmem:[#allocation5 + $0x8] sm:$0xf]
    %v46 = vld [vmem:[#allocation5 + $0xc] sm:$0xf]
    %v47 = vld [vmem:[#allocation5 + $0x10] sm:$0x3]
    %v53 = vunpack.c.l.b16 %v43
    %v54 = vunpack.c.l.b16 %v44
    %v55 = vunpack.c.l.b16 %v45
    %v56 = vunpack.c.l.b16 %v46
    %v57 = vunpack.c.l.b16 %v47
    %v58 = vpack.c.b16 %v54, %v53
    %v59 = vpack.c.b16 %v56, %v55
    %v60 = vpack.c.b16 %v57, %v57
    %vm63 = vcmask 293888
    %v65 = vsel %vm63, %v42, 0
    %vm67 = vcmask 1041408
    %v69 = vsel %vm67, %v60, 0
    %71 = vmatprep.subr.bf16.mxu0 0
    %72 = vmatpush1.bf16.msra.mxu0 %v58
    %73 = vmatprep.subr.bf16.mxu0 0
    %74 = vmatpush1.bf16.msra.mxu0 %v59
    %75 = vmatprep.subr.bf16.mxu0 0
    %76 = vmatpush1.bf16.msra.mxu0 %v69
    %77 = vmatprep.subr.bf16.mxu0 0
    %78 = vmatpush1.bf16.msra.mxu0 0
    %79 = vmatprep.subr.bf16.mxu0 0
    %80 = vmatpush1.bf16.msra.mxu0 0
    %81 = vmatprep.subr.bf16.mxu0 0
    %82 = vmatpush1.bf16.msra.mxu0 0
    %83 = vmatprep.subr.bf16.mxu0 0
    %84 = vmatpush1.bf16.msra.mxu0 0
    %85 = vmatprep.subr.bf16.mxu0 0
    %86 = vmatpush1.bf16.msra.mxu0 0
    %87 = vmatprep.subr.bf16.mxu0 0
    %88 = vmatpush1.bf16.msra.mxu0 0
    %89 = vmatprep.subr.bf16.mxu0 0
    %90 = vmatpush1.bf16.msra.mxu0 0
    %91 = vmatprep.subr.bf16.mxu0 0
    %92 = vmatpush1.bf16.msra.mxu0 0
    %93 = vmatprep.subr.bf16.mxu0 0
    %94 = vmatpush1.bf16.msra.mxu0 0
    %95 = vmatprep.subr.bf16.mxu0 0
    %96 = vmatpush1.bf16.msra.mxu0 0
    %97 = vmatprep.subr.bf16.mxu0 0
    %98 = vmatpush1.bf16.msra.mxu0 0
    %99 = vmatprep.subr.bf16.mxu0 0
    %100 = vmatpush1.bf16.msra.mxu0 0
    %101 = vmatprep.subr.bf16.mxu0 0
    %102 = vmatpush1.bf16.msra.mxu0 0
    %103 = vmatprep.mubr.bf16.mxu0 0
    %104 = vmatmul.mubr.bf16.gmra.mrb[0].mxu0 %v65
    %v105 = vpop.f32.mrb[0].mxu0
    %v106 = vadd.f32 0.0, %v105
    %v107 = vpop.f32.mrb[0].mxu0
    %v108 = vpop.f32.mrb[0].mxu0
    %v109 = vpop.f32.mrb[0].mxu0
    %110 = vdwg.mxu0
    %v111 = vpack.c.bf16 %v106, %v106
    %112 = vst [vmem:[#allocation7] sm:$0x3] %v111
    %vm113 = vcmask 1043456
    %v114 = vsel %vm113, %v106, 0.0
    %115 = vadd.xlane.f32.xlu0 %v114
    %v116 = vpop.xlane.xlu0 %115
    %vm117 = vcmask 3072
    %118 = vst.msk [vmem:[%s3] sm:$0xf] %vm117, %v116
    %v119 = vmul.f32 %v106, %v106
    %v120 = vsel %vm113, %v119, 0.0
    %121 = vadd.xlane.f32.xlu0 %v120
    %v122 = vpop.xlane.xlu0 %121
    %123 = vst.msk [vmem:[%s4] sm:$0xf] %vm117, %v122
    // Predicated region
    $region18: #{tpu_custom_call.1} parent=1 // pred_check
      _
    $region19: #{tpu_custom_call.1} parent=1 // pred_check_branch
      %125 = sbr.rel (0) target = $region21
    $region20: #{tpu_custom_call.1} parent=1 // pred_region
      %s127 = ssub.s32 32, 32
      %128 = vsyncadd [#allocation4], %s127
      %s130 = sshll.u32 [#allocation7], 4
      %s131 = int_to_ptr.vmem [resolvable:$true] %s130
      %133 = dma.vmem_to_hbm [thread:$0]  %s131, 32, %s2, [#allocation4]
    $region21: #{tpu_custom_call.1} parent=1 // pred_fallthru
      _
    // Predicated region
    $region22: #{tpu_custom_call.1} parent=1 // pred_check
      _
    $region23: #{tpu_custom_call.1} parent=1 // pred_check_branch
      %135 = sbr.rel (0) target = $region25
    $region24: #{tpu_custom_call.1} parent=1 // pred_region
      _
    $region25: #{tpu_custom_call.1} parent=1 // pred_fallthru
      _
    // Predicated region
    $region26: #{tpu_custom_call.1} parent=1 // pred_check
      _
    $region27: #{tpu_custom_call.1} parent=1 // pred_check_branch
      %137 = sbr.rel (0) target = $region29
    $region28: #{tpu_custom_call.1} parent=1 // pred_region
      _
    $region29: #{tpu_custom_call.1} parent=1 // pred_fallthru
      _
    // Predicated region
    $region30: #{tpu_custom_call.1} parent=1 // pred_check
      _
    $region31: #{tpu_custom_call.1} parent=1 // pred_check_branch
      %139 = sbr.rel (0) target = $region33
    $region32: #{tpu_custom_call.1} parent=1 // pred_region
      %140 = dma.done [#allocation4], 32
    $region33: #{tpu_custom_call.1} parent=1 // pred_fallthru
      _
    // Predicated region
    $region34: #{tpu_custom_call.1} parent=1 // pred_check
      _
    $region35: #{tpu_custom_call.1} parent=1 // pred_check_branch
      %142 = sbr.rel (0) target = $region37
    $region36: #{tpu_custom_call.1} parent=1 // pred_region
      _
    $region37: #{tpu_custom_call.1} parent=1 // pred_fallthru
      _
    // Predicated region
    $region38: #{tpu_custom_call.1} parent=1 // pred_check
      _
    $region39: #{tpu_custom_call.1} parent=1 // pred_check_branch
      %144 = sbr.rel (0) target = $region41
    $region40: #{tpu_custom_call.1} parent=1 // pred_region
      _
    $region41: #{tpu_custom_call.1} parent=1 // pred_fallthru
      _
    %145 = vsyncpa [#allocation3], 1
    %146 = vsyncpa [#allocation6], 1
    %147 = vsyncpa [#allocation4], 1

</llo_original>
